<compile_context>
chip_gen: v7x
topology: tpu7x:2x2x1
jax: 0.10.0
libtpu: 0.0.40
codegen_flags: <defaults>
</compile_context>

<pallas_src>
import functools
import math

import jax
import jax.numpy as jnp
from jax.experimental import pallas as pl
from jax.experimental.pallas import tpu as pltpu


# ----------------------------------------------------------------------------
# Kernel 1: input projection  (B, Senc, Denc) f32 -> (B, Senc, D) bf16
# ----------------------------------------------------------------------------

def _input_proj_kernel(enc_ref, w_ref, b_ref, o_ref):
  y = jnp.dot(enc_ref[0].astype(jnp.bfloat16), w_ref[...],
              preferred_element_type=jnp.float32) + b_ref[...]
  o_ref[0] = y.astype(jnp.bfloat16)


# ----------------------------------------------------------------------------
# Kernel 2: all QFormer layers, grid = (num_layers,), batch folded into M.
# ----------------------------------------------------------------------------

def _qformer_layers_kernel(
    # inputs ------------------------------------------------------------
    qt_ref,                    # (1, Nq, D)      f32  query tokens
    encp_ref,                  # (B, Senc, D)    bf16 projected encoder
    c_wq_ref, c_bq_ref,        # (1, D, D) bf16, (1, 1, D) f32   (scale folded)
    c_wkv_ref, c_bkv_ref,      # (1, D, 2D) bf16, (1, 1, 2D) f32
    c_wo_ref, c_bo_ref,        # (1, D, D) bf16, (1, 1, D) f32
    s_wqkv_ref, s_bqkv_ref,    # (1, D, 3D) bf16, (1, 1, 3D) f32 (q-part scaled)
    s_wo_ref, s_bo_ref,        # (1, D, D) bf16, (1, 1, D) f32
    ln1_g_ref, ln1_b_ref,      # (1, 1, D) f32
    ln2_g_ref, ln2_b_ref,      # (1, 1, D) f32
    ln3_g_ref, ln3_b_ref,      # (1, 1, D) f32
    mlp_w1_ref, mlp_b1_ref,    # (1, D, 4D) bf16, (1, 1, 4D) f32
    mlp_w2_ref, mlp_b2_ref,    # (1, 4D, D) bf16, (1, 1, D) f32
    # output ------------------------------------------------------------
    o_ref,                     # (B, Nq, D)
    # scratch -----------------------------------------------------------
    q_scr,                     # (B*Nq, D) f32   query state carried over layers
    *, num_heads, eps):

  f32, bf16 = jnp.float32, jnp.bfloat16
  B, Senc, D = encp_ref.shape
  Nq = qt_ref.shape[1]
  M = B * Nq
  H = num_heads
  dh = D // H

  l = pl.program_id(0)

  # ---- one-time init: broadcast query tokens across the batch ----------
  @pl.when(l == 0)
  def _init():
    qt = qt_ref[0].astype(f32)                       # (Nq, D)
    for b in range(B):                               # static, small
      q_scr[pl.ds(b * Nq, Nq), :] = qt

  x = q_scr[...]                                     # (M, D) f32 residual stream

  # Residual add + LayerNorm (two-pass variance, matches nn.LayerNorm).
  def add_ln(res, y, g, b):
    z = res + y
    mean = jnp.mean(z, axis=-1, keepdims=True)
    zc = z - mean
    var = jnp.mean(zc * zc, axis=-1, keepdims=True)
    return zc * jax.lax.rsqrt(var + eps) * g + b

  # Multi-head attention with per-head output-projection accumulation
  # (no concatenate).  Softmax scale is pre-folded into the q projection.
  def mha(q2, k2, v2, ks, wo_ref, bo_ref):
    q3 = q2.reshape(B, Nq, D).astype(bf16)           # (B, Nq, D)
    k3 = k2.reshape(B, ks, D).astype(bf16)           # (B, ks, D)
    v3 = v2.reshape(B, ks, D).astype(bf16)
    wo = wo_ref[0]                                   # (D, D) bf16
    acc = jnp.zeros((M, D), f32)
    for h in range(H):                               # static unroll (small H)
      lo, hi = h * dh, (h + 1) * dh
      s = jnp.einsum('bqd,bkd->bqk', q3[:, :, lo:hi], k3[:, :, lo:hi],
                     preferred_element_type=f32)     # (B, Nq, ks)
      m = jnp.max(s, axis=-1, keepdims=True)
      p = jnp.exp(s - m)
      denom = jnp.sum(p, axis=-1, keepdims=True)
      pv = jnp.einsum('bqk,bkd->bqd', p.astype(bf16), v3[:, :, lo:hi],
                      preferred_element_type=f32)    # (B, Nq, dh) un-normalized
      oh = (pv / denom).reshape(M, dh)               # normalize after PV (fewer elems)
      acc = acc + jnp.dot(oh.astype(bf16), wo[lo:hi, :],
                          preferred_element_type=f32)
    return acc + bo_ref[0]

  # ---------------- cross attention (queries attend to encoder) ----------
  xb = x.astype(bf16)
  q = jnp.dot(xb, c_wq_ref[0], preferred_element_type=f32) + c_bq_ref[0]
  e2 = encp_ref[...].reshape(B * Senc, D)            # bf16
  kv = jnp.dot(e2, c_wkv_ref[0], preferred_element_type=f32) + c_bkv_ref[0]
  attn = mha(q, kv[:, :D], kv[:, D:], Senc, c_wo_ref, c_bo_ref)
  x = add_ln(x, attn, ln1_g_ref[0], ln1_b_ref[0])

  # ---------------- self attention ----------------------------------------
  xb = x.astype(bf16)
  qkv = jnp.dot(xb, s_wqkv_ref[0], preferred_element_type=f32) + s_bqkv_ref[0]
  attn = mha(qkv[:, :D], qkv[:, D:2 * D], qkv[:, 2 * D:], Nq, s_wo_ref, s_bo_ref)
  x = add_ln(x, attn, ln2_g_ref[0], ln2_b_ref[0])

  # ---------------- MLP: Linear -> exact GELU (erf) -> Linear --------------
  xb = x.astype(bf16)
  h1 = jnp.dot(xb, mlp_w1_ref[0], preferred_element_type=f32) + mlp_b1_ref[0]
  h1 = 0.5 * h1 * (1.0 + jax.lax.erf(h1 * (1.0 / math.sqrt(2.0))))
  y = jnp.dot(h1.astype(bf16), mlp_w2_ref[0],
              preferred_element_type=f32) + mlp_b2_ref[0]
  x = add_ln(x, y, ln3_g_ref[0], ln3_b_ref[0])

  q_scr[...] = x                                     # carry to next layer

  @pl.when(l == pl.num_programs(0) - 1)
  def _finalize():
    o_ref[...] = x.reshape(B, Nq, D).astype(o_ref.dtype)


# ----------------------------------------------------------------------------
# Wrapper
# ----------------------------------------------------------------------------

def _shared_spec(a):
  nd = a.ndim
  return pl.BlockSpec(a.shape, lambda l: (0,) * nd)


def _layer_spec(a):
  nd = a.ndim
  return pl.BlockSpec((1,) + a.shape[1:], lambda l: (l,) + (0,) * (nd - 1))


def qformer_forward(encoder_outputs, params, num_heads):
  B, Senc, Denc = encoder_outputs.shape
  _, Nq, D = params["query_tokens"].shape
  L = params["c_wq"].shape[0]
  H4 = params["mlp_w1"].shape[-1]
  assert D % num_heads == 0
  dh = D // num_heads
  scale = 1.0 / math.sqrt(dh)
  f32, bf16 = jnp.float32, jnp.bfloat16

  # --- one-time parameter prep: fold softmax scale into Wq/bq, cast to bf16 ---
  c_wq = (params["c_wq"] * scale).astype(bf16)
  c_bq = (params["c_bq"] * scale).astype(f32).reshape(L, 1, D)
  s_wqkv = params["s_wqkv"].at[:, :, :D].multiply(scale).astype(bf16)
  s_bqkv = params["s_bqkv"].at[:, :D].multiply(scale).astype(f32).reshape(L, 1, 3 * D)

  # --- input projection (separate tiny call; raw encoder / proj weights are
  #     NOT kept resident during the layer loop) ------------------------------
  enc_proj = pl.pallas_call(
      _input_proj_kernel,
      out_shape=jax.ShapeDtypeStruct((B, Senc, D), bf16),
      grid_spec=pltpu.PrefetchScalarGridSpec(
          num_scalar_prefetch=0,
          grid=(B,),
          in_specs=[pl.BlockSpec((1, Senc, Denc), lambda b: (b, 0, 0)),
                    pl.BlockSpec((Denc, D), lambda b: (0, 0)),
                    pl.BlockSpec((1, D), lambda b: (0, 0))],
          out_specs=pl.BlockSpec((1, Senc, D), lambda b: (b, 0, 0))),
      compiler_params=pltpu.CompilerParams(
          dimension_semantics=("parallel",),
          vmem_limit_bytes=64 * 1024 * 1024),
  )(encoder_outputs, params["proj_w"].astype(bf16),
    params["proj_b"].reshape(1, D).astype(f32))

  # --- main fused layer loop -------------------------------------------------
  args = [
      params["query_tokens"].astype(f32),                       # (1, Nq, D)
      enc_proj,                                                  # (B, Senc, D)
      c_wq, c_bq,
      params["c_wkv"].astype(bf16),
      params["c_bkv"].reshape(L, 1, 2 * D).astype(f32),
      params["c_wo"].astype(bf16),
      params["c_bo"].reshape(L, 1, D).astype(f32),
      s_wqkv, s_bqkv,
      params["s_wo"].astype(bf16),
      params["s_bo"].reshape(L, 1, D).astype(f32),
      params["ln1_g"].reshape(L, 1, D).astype(f32),
      params["ln1_b"].reshape(L, 1, D).astype(f32),
      params["ln2_g"].reshape(L, 1, D).astype(f32),
      params["ln2_b"].reshape(L, 1, D).astype(f32),
      params["ln3_g"].reshape(L, 1, D).astype(f32),
      params["ln3_b"].reshape(L, 1, D).astype(f32),
      params["mlp_w1"].astype(bf16),
      params["mlp_b1"].reshape(L, 1, H4).astype(f32),
      params["mlp_w2"].astype(bf16),
      params["mlp_b2"].reshape(L, 1, D).astype(f32),
  ]

  in_specs = [_shared_spec(args[0]),         # query tokens (resident, one DMA)
              _shared_spec(args[1])]         # projected encoder (resident)
  in_specs += [_layer_spec(a) for a in args[2:]]   # per-layer params, streamed

  kern = functools.partial(_qformer_layers_kernel, num_heads=num_heads, eps=1e-5)

  return pl.pallas_call(
      kern,
      out_shape=jax.ShapeDtypeStruct((B, Nq, D), encoder_outputs.dtype),
      grid_spec=pltpu.PrefetchScalarGridSpec(
          num_scalar_prefetch=0,
          grid=(L,),                          # weights DMA'd once per layer
          in_specs=in_specs,
          out_specs=pl.BlockSpec((B, Nq, D), lambda l: (0, 0, 0)),
          scratch_shapes=[
              pltpu.VMEM((B * Nq, D), f32),   # batch-folded query-state carry
          ]),
      compiler_params=pltpu.CompilerParams(
          dimension_semantics=("arbitrary",),
          # explicit scoped-VMEM budget so next-layer weights double-buffer;
          # lower this (and K-tile the MLP weights) for v7x's 64 MiB at prod D.
          vmem_limit_bytes=64 * 1024 * 1024),
  )(*args)


# ----------------------------------------------------------------------------
# Pure-JAX reference (same math, f32, for correctness check only).
# ----------------------------------------------------------------------------

def qformer_reference(encoder_outputs, params, num_heads):
  B, _, _ = encoder_outputs.shape
  _, Nq, D = params["query_tokens"].shape
  L = params["c_wq"].shape[0]
  dh = D // num_heads

  enc = encoder_outputs @ params["proj_w"] + params["proj_b"]
  x = jnp.broadcast_to(params["query_tokens"], (B, Nq, D))

  def mha(q_in, kv_in, wq, bq, wk, bk, wv, bv, wo, bo):
    q = q_in @ wq + bq
    k = kv_in @ wk + bk
    v = kv_in @ wv + bv
    def split(t):
      return t.reshape(t.shape[0], t.shape[1], num_heads, dh).transpose(0, 2, 1, 3)
    qh, kh, vh = split(q), split(k), split(v)
    s = jnp.einsum("bhqd,bhkd->bhqk", qh, kh) / math.sqrt(dh)
    p = jax.nn.softmax(s, axis=-1)
    o = jnp.einsum("bhqk,bhkd->bhqd", p, vh)
    o = o.transpose(0, 2, 1, 3).reshape(q_in.shape[0], q_in.shape[1], D)
    return o @ wo + bo

  def ln(z, g, b, eps=1e-5):
    m = z.mean(-1, keepdims=True)
    v = ((z - m) ** 2).mean(-1, keepdims=True)
    return (z - m) / jnp.sqrt(v + eps) * g + b

  for li in range(L):
    a = mha(x, enc,
            params["c_wq"][li], params["c_bq"][li],
            params["c_wkv"][li][:, :D], params["c_bkv"][li][:D],
            params["c_wkv"][li][:, D:], params["c_bkv"][li][D:],
            params["c_wo"][li], params["c_bo"][li])
    x = ln(x + a, params["ln1_g"][li], params["ln1_b"][li])
    a = mha(x, x,
            params["s_wqkv"][li][:, :D], params["s_bqkv"][li][:D],
            params["s_wqkv"][li][:, D:2 * D], params["s_bqkv"][li][D:2 * D],
            params["s_wqkv"][li][:, 2 * D:], params["s_bqkv"][li][2 * D:],
            params["s_wo"][li], params["s_bo"][li])
    x = ln(x + a, params["ln2_g"][li], params["ln2_b"][li])
    h = x @ params["mlp_w1"][li] + params["mlp_b1"][li]
    h = 0.5 * h * (1.0 + jax.lax.erf(h / math.sqrt(2.0)))
    y = h @ params["mlp_w2"][li] + params["mlp_b2"][li]
    x = ln(x + y, params["ln3_g"][li], params["ln3_b"][li])
  return x


def _round_weights_to_bf16(params):
  """Reference uses the same bf16-rounded weights as the kernel."""
  wkeys = {"proj_w", "c_wq", "c_wkv", "c_wo", "s_wqkv", "s_wo",
           "mlp_w1", "mlp_w2"}
  return {k: (v.astype(jnp.bfloat16).astype(jnp.float32) if k in wkeys else v)
          for k, v in params.items()}


# ----------------------------------------------------------------------------
# Deterministic synthetic parameters (per-layer weights stacked on a lead axis).
# ----------------------------------------------------------------------------

def init_qformer_params(key, num_query_tokens, query_dim, encoder_dim,
                        num_layers, scale=0.02):
  D = query_dim
  ks = jax.random.split(key, 17)

  def nrm(k, shape):
    return jax.random.normal(k, shape, jnp.float32) * scale

  return {
      "query_tokens": jax.random.normal(
          ks[0], (1, num_query_tokens, D), jnp.float32),
      "proj_w": nrm(ks[1], (encoder_dim, D)),
      "proj_b": nrm(ks[2], (D,)),
      "c_wq": nrm(ks[3], (num_layers, D, D)),
      "c_bq": nrm(ks[4], (num_layers, D)),
      "c_wkv": nrm(ks[5], (num_layers, D, 2 * D)),
      "c_bkv": nrm(ks[6], (num_layers, 2 * D)),
      "c_wo": nrm(ks[7], (num_layers, D, D)),
      "c_bo": nrm(ks[8], (num_layers, D)),
      "s_wqkv": nrm(ks[9], (num_layers, D, 3 * D)),
      "s_bqkv": nrm(ks[10], (num_layers, 3 * D)),
      "s_wo": nrm(ks[11], (num_layers, D, D)),
      "s_bo": nrm(ks[12], (num_layers, D)),
      "ln1_g": jnp.ones((num_layers, D), jnp.float32),
      "ln1_b": jnp.zeros((num_layers, D), jnp.float32),
      "ln2_g": jnp.ones((num_layers, D), jnp.float32),
      "ln2_b": jnp.zeros((num_layers, D), jnp.float32),
      "ln3_g": jnp.ones((num_layers, D), jnp.float32),
      "ln3_b": jnp.zeros((num_layers, D), jnp.float32),
      "mlp_w1": nrm(ks[13], (num_layers, D, 4 * D)),
      "mlp_b1": nrm(ks[14], (num_layers, 4 * D)),
      "mlp_w2": nrm(ks[15], (num_layers, 4 * D, D)),
      "mlp_b2": nrm(ks[16], (num_layers, D)),
  }


# ----------------------------------------------------------------------------
# Main
# ----------------------------------------------------------------------------

if __name__ == "__main__":
  batch = 2
  enc_seq = 16
  encoder_dim = 64
  num_query_tokens = 8
  query_dim = 32
  num_layers = 2
  num_heads = 4

  key = jax.random.PRNGKey(0)
  k_params, k_in = jax.random.split(key)
  params = init_qformer_params(k_params, num_query_tokens, query_dim,
                               encoder_dim, num_layers)
  encoder_outputs = jax.random.normal(
      k_in, (batch, enc_seq, encoder_dim), jnp.float32)

  out = qformer_forward(encoder_outputs, params, num_heads)
  out = jax.block_until_ready(out)

  assert out.shape == (batch, num_query_tokens, query_dim)
  assert jnp.all(jnp.isfinite(out))

  ref = qformer_reference(encoder_outputs, _round_weights_to_bf16(params),
                          num_heads)
  max_err = float(jnp.max(jnp.abs(out - ref)))
  assert max_err < 5e-2, f"max abs err vs reference: {max_err}"

  print("KERNEL_OK")
</pallas_src>

<mosaic_0001>
module attributes {stable_mosaic.version = 11 : i64} {
  func.func @_input_proj_kernel(%arg0: i32, %arg1: memref<1x16x64xf32, #tpu.memory_space<vmem>>, %arg2: memref<64x32xbf16, #tpu.memory_space<vmem>>, %arg3: memref<1x32xf32, #tpu.memory_space<vmem>>, %arg4: memref<1x16x32xbf16, #tpu.memory_space<vmem>>) attributes {dimension_semantics = [#tpu.dimension_semantics<parallel>], iteration_bounds = array<i64: 2>, scalar_prefetch = 0 : i64, scratch_operands = 0 : i64, tpu.core_type = #tpu.core_type<tc>, window_params = [{transform_indices = @transform_0, window_bounds = array<i64: 1, 16, 64>}, {pipeline_mode = #tpu.pipeline_mode<synchronous>, transform_indices = @transform_1, window_bounds = array<i64: 64, 32>}, {pipeline_mode = #tpu.pipeline_mode<synchronous>, transform_indices = @transform_2, window_bounds = array<i64: 1, 32>}, {transform_indices = @transform_3, window_bounds = array<i64: 1, 16, 32>}]} {
    %c0 = arith.constant 0 : index
    %c0_0 = arith.constant 0 : index
    %c0_1 = arith.constant 0 : index
    %0 = vector.load %arg1[%c0, %c0_0, %c0_1] : memref<1x16x64xf32, #tpu.memory_space<vmem>>, vector<1x16x64xf32>
    %1 = vector.shape_cast %0 : vector<1x16x64xf32> to vector<16x64xf32>
    %2 = arith.truncf %1 : vector<16x64xf32> to vector<16x64xbf16>
    %c0_2 = arith.constant 0 : index
    %c0_3 = arith.constant 0 : index
    %3 = vector.load %arg2[%c0_2, %c0_3] : memref<64x32xbf16, #tpu.memory_space<vmem>>, vector<64x32xbf16>
    %cst = arith.constant dense<0.000000e+00> : vector<16x32xf32>
    %4 = tpu.matmul %2, %3, %cst {dimension_numbers = #tpu.dot_dimension_numbers<[1], [0], [0], [1], [0, 0, 1, 1], [], []>} : vector<16x64xbf16>, vector<64x32xbf16>, vector<16x32xf32> -> vector<16x32xf32>
    %c0_4 = arith.constant 0 : index
    %c0_5 = arith.constant 0 : index
    %5 = vector.load %arg3[%c0_4, %c0_5] : memref<1x32xf32, #tpu.memory_space<vmem>>, vector<1x32xf32>
    %6 = vector.broadcast %5 : vector<1x32xf32> to vector<16x32xf32>
    %7 = arith.addf %4, %6 : vector<16x32xf32>
    %8 = arith.truncf %7 : vector<16x32xf32> to vector<16x32xbf16>
    %c0_6 = arith.constant 0 : index
    %c0_7 = arith.constant 0 : index
    %c0_8 = arith.constant 0 : index
    %9 = vector.load %arg4[%c0_6, %c0_7, %c0_8] : memref<1x16x32xbf16, #tpu.memory_space<vmem>>, vector<1x16x32xbf16>
    %10 = vector.shape_cast %9 : vector<1x16x32xbf16> to vector<16x32xbf16>
    %11 = vector.shape_cast %8 : vector<16x32xbf16> to vector<1x16x32xbf16>
    tpu.vector_store %arg4[%c0_6, %c0_7, %c0_8], %11 {strides = array<i32>} : memref<1x16x32xbf16, #tpu.memory_space<vmem>>, vector<1x16x32xbf16>,
    return
  }
  func.func @transform_0(%arg0: i32) -> (i32, i32, i32) {
    %c0_i32 = arith.constant 0 : i32
    %c0_i32_0 = arith.constant 0 : i32
    %c0_i32_1 = arith.constant 0 : i32
    return %arg0, %c0_i32, %c0_i32_0 : i32, i32, i32
  }
  func.func @transform_1(%arg0: i32) -> (i32, i32) {
    %c0_i32 = arith.constant 0 : i32
    %c0_i32_0 = arith.constant 0 : i32
    %c0_i32_1 = arith.constant 0 : i32
    return %c0_i32, %c0_i32_0 : i32, i32
  }
  func.func @transform_2(%arg0: i32) -> (i32, i32) {
    %c0_i32 = arith.constant 0 : i32
    %c0_i32_0 = arith.constant 0 : i32
    %c0_i32_1 = arith.constant 0 : i32
    return %c0_i32, %c0_i32_0 : i32, i32
  }
  func.func @transform_3(%arg0: i32) -> (i32, i32, i32) {
    %c0_i32 = arith.constant 0 : i32
    %c0_i32_0 = arith.constant 0 : i32
    %c0_i32_1 = arith.constant 0 : i32
    return %arg0, %c0_i32, %c0_i32_0 : i32, i32, i32
  }
}

</mosaic_0001>

<llo_original>
// kernel: tpu_custom_call.1
$region0: #{tpu_custom_call.1}
  #allocation0 [shape = 'u32[]', space=smem, size = 0x4, offset = 0x4, fixed_abs, tag = 'smem constant byte address 0x4 - core index']
  #allocation1 [shape = 'u32[144,128]{1,0:T(1,128)}', space=vmem, size = 0x12000, scoped, tag = 'internal scratch']
  %s0 = inlined_call_operand.hbm [shape: f32[2,16,64], index: 0, kind: input, shape index: {}]
  %s1 = inlined_call_operand.hbm [shape: bf16[64,32], index: 1, kind: input, shape index: {}]
  %s2 = inlined_call_operand.hbm [shape: f32[1,32], index: 2, kind: input, shape index: {}]
  %s3 = inlined_call_operand.hbm [shape: bf16[2,16,32], index: 3, kind: output, shape index: {}]
  %s4 = sld [smem:[#allocation0]]
  $region57: #{tpu_custom_call.1} parent=0
    _
  %s6 = ssub.s32 1, %s4
  %s7 = scalar_select 0, %s6, %s4
  $region1: #{tpu_custom_call.1} parent=0
    #allocation2 [shape = 'u8[16384]{0}', space=vmem, size = 0x4000, scoped, tag = 'input window, operand 0']
    #allocation3 [shape = 's32[2]{0}', space=sflag, size = 0x8, scoped, tag = 'scoped memory for tpu_custom_call.1']
    #allocation4 [shape = 's32[2]{0}', space=sflag, size = 0x8, scoped, tag = 'scoped memory for tpu_custom_call.1']
    #allocation5 [shape = 'u8[16384]{0}', space=vmem, size = 0x4000, scoped, tag = 'input window, operand 1, single buffered']
    #allocation6 [shape = 's32[1]{0}', space=sflag, size = 0x4, scoped, tag = 'scoped memory for tpu_custom_call.1']
    #allocation7 [shape = 'u8[512]{0}', space=vmem, size = 0x400, scoped, tag = 'input window, operand 2, single buffered']
    #allocation8 [shape = 'u8[8192]{0}', space=vmem, size = 0x2000, scoped, tag = 'output window, operand 0']
    %8 = vsyncpa [#allocation3], 0
    %s9 = scalar_lea.sflag [#allocation3], 1
    %10 = vsyncpa %s9, 0
    %11 = vsyncpa [#allocation6], 0
    %12 = vsyncpa [#allocation4], 0
    %s13 = scalar_lea.sflag [#allocation4], 1
    %14 = vsyncpa %s13, 0
    loop: start=0, step=1, limit=4
    $region2: #{tpu_custom_call.1} parent=1 // loop_pre_header
      _
    $region3: #{tpu_custom_call.1} parent=1 // loop_header
      %s16 = sphi 0, %s20
      %p17 = scmp.ge.s32.totalorder %s16, 4
      %s26 = sphi 0, %s28
      %s29 = sphi 0, %s26
      %s30 = sphi 0, %s29
      %s46 = sphi 0, %s30
      %s50 = sphi 0, %s50
      %s52 = sphi 0, %s50
      %s53 = sphi 0, %s52
      %s67 = sphi 0, %s53
      %s71 = sphi 0, %s71
      %s73 = sphi 0, %s71
      %s74 = sphi 0, %s73
      %s88 = sphi 0, %s74
      %s94 = sphi 0, %s96
      %s97 = sphi 0, %s94
      %s98 = sphi 0, %s97
      %s114 = sphi 0, %s98
    $region4: #{tpu_custom_call.1} parent=1 // loop_header_branch
      %19 = sbr.rel (%p17) target = $region8
    $region5: #{tpu_custom_call.1} parent=1 // loop_body
      %s21 = ssub.s32 %s16, 1
      %s22 = ssub.s32 %s16, 2
      %s23 = sadd.s32 %s16, 1
      %s24 = ssub.s32 %s16, %s23
      %p25 = scmp.eq.s32.totalorder %s24, 0
      %s27 = sadd.s32 %s26, 1
      %s28 = scalar_select %p25, %s26, %s27
      %p31 = pneg %p25
      %p32 = scmp.eq.s32.totalorder %s16, 1
      %p33 = por %p31, %p32
      %p34 = scmp.ne.s32.totalorder %s26, %s29
      %p35 = scmp.eq.s32.totalorder %s16, 0
      %p36 = por %p34, %p35
      %p37 = scmp.ne.s32.totalorder %s26, %s29
      %p38 = scmp.eq.s32.totalorder %s21, 1
      %p39 = por %p37, %p38
      %p40 = scmp.ne.s32.totalorder %s29, %s30
      %p41 = scmp.eq.s32.totalorder %s21, 0
      %p42 = por %p40, %p41
      %p43 = scmp.ne.s32.totalorder %s29, %s30
      %p44 = scmp.eq.s32.totalorder %s22, 1
      %p45 = por %p43, %p44
      %p47 = scmp.ne.s32.totalorder %s30, %s46
      %p48 = scmp.eq.s32.totalorder %s22, 0
      %p49 = por %p47, %p48
      %s51 = sadd.s32 %s50, 1
      %p54 = scmp.eq.s32.totalorder %s16, 1
      %p55 = scmp.ne.s32.totalorder %s50, %s52
      %p56 = scmp.eq.s32.totalorder %s16, 0
      %p57 = por %p55, %p56
      %p58 = scmp.ne.s32.totalorder %s50, %s52
      %p59 = scmp.eq.s32.totalorder %s21, 1
      %p60 = por %p58, %p59
      %p61 = scmp.ne.s32.totalorder %s52, %s53
      %p62 = scmp.eq.s32.totalorder %s21, 0
      %p63 = por %p61, %p62
      %p64 = scmp.ne.s32.totalorder %s52, %s53
      %p65 = scmp.eq.s32.totalorder %s22, 1
      %p66 = por %p64, %p65
      %p68 = scmp.ne.s32.totalorder %s53, %s67
      %p69 = scmp.eq.s32.totalorder %s22, 0
      %p70 = por %p68, %p69
      %s72 = sadd.s32 %s71, 1
      %p75 = scmp.eq.s32.totalorder %s16, 1
      %p76 = scmp.ne.s32.totalorder %s71, %s73
      %p77 = scmp.eq.s32.totalorder %s16, 0
      %p78 = por %p76, %p77
      %p79 = scmp.ne.s32.totalorder %s71, %s73
      %p80 = scmp.eq.s32.totalorder %s21, 1
      %p81 = por %p79, %p80
      %p82 = scmp.ne.s32.totalorder %s73, %s74
      %p83 = scmp.eq.s32.totalorder %s21, 0
      %p84 = por %p82, %p83
      %p85 = scmp.ne.s32.totalorder %s73, %s74
      %p86 = scmp.eq.s32.totalorder %s22, 1
      %p87 = por %p85, %p86
      %p89 = scmp.ne.s32.totalorder %s74, %s88
      %p90 = scmp.eq.s32.totalorder %s22, 0
      %p91 = por %p89, %p90
      %s92 = ssub.s32 %s16, %s23
      %p93 = scmp.eq.s32.totalorder %s92, 0
      %s95 = sadd.s32 %s94, 1
      %s96 = scalar_select %p93, %s94, %s95
      %p99 = pneg %p93
      %p100 = scmp.eq.s32.totalorder %s16, 1
      %p101 = por %p99, %p100
      %p102 = scmp.ne.s32.totalorder %s94, %s97
      %p103 = scmp.eq.s32.totalorder %s16, 0
      %p104 = por %p102, %p103
      %p105 = scmp.ne.s32.totalorder %s94, %s97
      %p106 = scmp.eq.s32.totalorder %s21, 1
      %p107 = por %p105, %p106
      %p108 = scmp.ne.s32.totalorder %s97, %s98
      %p109 = scmp.eq.s32.totalorder %s21, 0
      %p110 = por %p108, %p109
      %p111 = scmp.ne.s32.totalorder %s97, %s98
      %p112 = scmp.eq.s32.totalorder %s22, 1
      %p113 = por %p111, %p112
      %p115 = scmp.ne.s32.totalorder %s98, %s114
      %p116 = scmp.eq.s32.totalorder %s22, 0
      %p117 = por %p115, %p116
      %p118 = scmp.le.s32.totalorder 1, %s16
      %p119 = scmp.lt.s32.totalorder %s16, 3
      %p120 = pnand %p118, %p119
      %p121 = pneg %p120
      // Predicated region
      $region9: #{tpu_custom_call.1} parent=5 // pred_check
        _
      $region10: #{tpu_custom_call.1} parent=5 // pred_check_branch
        %123 = sbr.rel (%p120) target = $region12
      $region11: #{tpu_custom_call.1} parent=5 // pred_region
        %s124 = ssub.s32 %s16, 1
        // Predicated region
        $region13: #{tpu_custom_call.1} parent=11 // pred_check
          %p125 = pneg %p63
        $region14: #{tpu_custom_call.1} parent=11 // pred_check_branch
          %127 = sbr.rel (%p125) target = $region16
        $region15: #{tpu_custom_call.1} parent=11 // pred_region
          %s129 = ssub.s32 512, 512
          %130 = vsyncadd [#allocation6], %s129
          %s131 = sshll.u32 [#allocation5], 4
          %s132 = int_to_ptr.vmem [resolvable:$true] %s131
          %137 = dma.hbm_to_vmem [thread:$0]  %s1, 512, %s132, [#allocation6], 64, 64, 4
        $region16: #{tpu_custom_call.1} parent=11 // pred_fallthru
          _
        // Predicated region
        $region17: #{tpu_custom_call.1} parent=11 // pred_check
          %p138 = pneg %p84
        $region18: #{tpu_custom_call.1} parent=11 // pred_check_branch
          %140 = sbr.rel (%p138) target = $region20
        $region19: #{tpu_custom_call.1} parent=11 // pred_region
          %s142 = ssub.s32 16, 16
          %143 = vsyncadd [#allocation6], %s142
          %s145 = sshll.u32 [#allocation7], 4
          %s146 = int_to_ptr.vmem [resolvable:$true] %s145
          %148 = dma.hbm_to_vmem [thread:$0]  %s2, 16, %s146, [#allocation6]
        $region20: #{tpu_custom_call.1} parent=11 // pred_fallthru
          _
      $region12: #{tpu_custom_call.1} parent=5 // pred_fallthru
        _
      %p149 = scmp.lt.s32.totalorder %s16, 2
      // Predicated region
      $region21: #{tpu_custom_call.1} parent=5 // pred_check
        %p150 = pneg %p149
      $region22: #{tpu_custom_call.1} parent=5 // pred_check_branch
        %152 = sbr.rel (%p150) target = $region24
      $region23: #{tpu_custom_call.1} parent=5 // pred_region
        // Predicated region
        $region25: #{tpu_custom_call.1} parent=23 // pred_check
          %p153 = pneg %p36
        $region26: #{tpu_custom_call.1} parent=23 // pred_check_branch
          %155 = sbr.rel (%p153) target = $region28
        $region27: #{tpu_custom_call.1} parent=23 // pred_region
          %s156 = sand.u32 %s26, 1
          %s157 = scalar_lea.sflag [#allocation3], %s156
          %s158 = sand.u32 %s26, 1
          %s159 = smul.addr %s158, 16
          %s160 = scalar_lea.vmem [#allocation2], %s159
          %s162 = ssub.s32 256, 256
          %163 = vsyncadd %s157, %s162
          %s164 = smul.addr %s16, 2
          %s165 = smul.addr %s164, 128
          %s166 = scalar_lea.hbm %s0, %s165
          %s167 = sshll.u32 %s160, 4
          %s168 = int_to_ptr.vmem [resolvable:$true] %s167
          %173 = dma.hbm_to_vmem [thread:$0]  %s166, 256, %s168, %s157, 128, 128, 8
        $region28: #{tpu_custom_call.1} parent=23 // pred_fallthru
          _
      $region24: #{tpu_custom_call.1} parent=5 // pred_fallthru
        _
      %p174 = scmp.le.s32.totalorder 1, %s16
      %p175 = scmp.lt.s32.totalorder %s16, 3
      %p176 = pnand %p174, %p175
      %p177 = pneg %p176
      // Predicated region
      $region29: #{tpu_custom_call.1} parent=5 // pred_check
        _
      $region30: #{tpu_custom_call.1} parent=5 // pred_check_branch
        %179 = sbr.rel (%p176) target = $region32
      $region31: #{tpu_custom_call.1} parent=5 // pred_region
        %s180 = ssub.s32 %s16, 1
        %s181 = sand.u32 %s29, 1
        %s182 = scalar_lea.sflag [#allocation3], %s181
        %s183 = sand.u32 %s29, 1
        %s184 = smul.addr %s183, 16
        %s185 = scalar_lea.vmem [#allocation2], %s184
        // Predicated region
        $region33: #{tpu_custom_call.1} parent=31 // pred_check
          %p186 = pneg %p42
        $region34: #{tpu_custom_call.1} parent=31 // pred_check_branch
          %188 = sbr.rel (%p186) target = $region36
        $region35: #{tpu_custom_call.1} parent=31 // pred_region
          %189 = dma.done %s182, 256
        $region36: #{tpu_custom_call.1} parent=31 // pred_fallthru
          _
        // Predicated region
        $region37: #{tpu_custom_call.1} parent=31 // pred_check
          %p190 = pneg %p63
        $region38: #{tpu_custom_call.1} parent=31 // pred_check_branch
          %192 = sbr.rel (%p190) target = $region40
        $region39: #{tpu_custom_call.1} parent=31 // pred_region
          %193 = dma.done [#allocation6], 512
        $region40: #{tpu_custom_call.1} parent=31 // pred_fallthru
          _
        // Predicated region
        $region41: #{tpu_custom_call.1} parent=31 // pred_check
          %p194 = pneg %p84
        $region42: #{tpu_custom_call.1} parent=31 // pred_check_branch
          %196 = sbr.rel (%p194) target = $region44
        $region43: #{tpu_custom_call.1} parent=31 // pred_region
          %197 = dma.done [#allocation6], 16
        $region44: #{tpu_custom_call.1} parent=31 // pred_fallthru
          _
        %s198 = sand.u32 %s29, 1
        %s199 = scalar_lea.sflag [#allocation3], %s198
        %s200 = sand.u32 %s29, 1
        %s201 = smul.addr %s200, 16
        %s202 = scalar_lea.vmem [#allocation2], %s201
        %p203 = pneg %p42
        %p204 = pneg %p39
        %p205 = pneg %p63
        %p206 = pneg %p60
        %p207 = pneg %p84
        %p208 = pneg %p81
        %p209 = pneg %p110
        %p210 = pneg %p107
        %s211 = sand.u32 %s97, 1
        %s212 = scalar_lea.sflag [#allocation4], %s211
        %s213 = sand.u32 %s97, 1
        %s214 = smul.addr %s213, 8
        %s215 = scalar_lea.vmem [#allocation8], %s214
        %v217 = vld [vmem:[%s185] sm:$0xff]
        %v218 = vld [vmem:[%s185 + $0x8] sm:$0xff]
        %v219 = vpack.c.bf16 %v218, %v217
        %v220 = vld [vmem:[#allocation5] sm:$0xf]
        %v221 = vld [vmem:[#allocation5 + $0x4] sm:$0xf]
        %v222 = vld [vmem:[#allocation5 + $0x8] sm:$0xf]
        %v223 = vld [vmem:[#allocation5 + $0xc] sm:$0xf]
        %v224 = vld [vmem:[#allocation5 + $0x10] sm:$0xf]
        %v225 = vld [vmem:[#allocation5 + $0x14] sm:$0xf]
        %v226 = vld [vmem:[#allocation5 + $0x18] sm:$0xf]
        %v227 = vld [vmem:[#allocation5 + $0x1c] sm:$0xf]
        %v228 = vld [vmem:[#allocation7] sm:$0x1]
        %v230 = vlaneseq
        %v231 = vshrl.u32 %v230, 7
        %v232 = vsub.s32 0, %v231
        %v233 = vrot.slane %v228, %v232
        %v243 = vunpack.c.l.b16 %v220
        %v244 = vunpack.c.l.b16 %v221
        %v245 = vunpack.c.l.b16 %v222
        %v246 = vunpack.c.l.b16 %v223
        %v247 = vunpack.c.l.b16 %v224
        %v248 = vunpack.c.l.b16 %v225
        %v249 = vunpack.c.l.b16 %v226
        %v250 = vunpack.c.l.b16 %v227
        %v251 = vpack.c.b16 %v244, %v243
        %v252 = vpack.c.b16 %v246, %v245
        %v253 = vpack.c.b16 %v248, %v247
        %v254 = vpack.c.b16 %v250, %v249
        %vm259 = vcmask 523264
        %v261 = vsel %vm259, %v219, 0
        %263 = vmatprep.subr.bf16.mxu0 0
        %264 = vmatpush1.bf16.msra.mxu0 %v251
        %265 = vmatprep.subr.bf16.mxu0 0
        %266 = vmatpush1.bf16.msra.mxu0 %v252
        %267 = vmatprep.subr.bf16.mxu0 0
        %268 = vmatpush1.bf16.msra.mxu0 %v253
        %269 = vmatprep.subr.bf16.mxu0 0
        %270 = vmatpush1.bf16.msra.mxu0 %v254
        %271 = vmatprep.subr.bf16.mxu0 0
        %272 = vmatpush1.bf16.msra.mxu0 0
        %273 = vmatprep.subr.bf16.mxu0 0
        %274 = vmatpush1.bf16.msra.mxu0 0
        %275 = vmatprep.subr.bf16.mxu0 0
        %276 = vmatpush1.bf16.msra.mxu0 0
        %277 = vmatprep.subr.bf16.mxu0 0
        %278 = vmatpush1.bf16.msra.mxu0 0
        %279 = vmatprep.subr.bf16.mxu0 0
        %280 = vmatpush1.bf16.msra.mxu0 0
        %281 = vmatprep.subr.bf16.mxu0 0
        %282 = vmatpush1.bf16.msra.mxu0 0
        %283 = vmatprep.subr.bf16.mxu0 0
        %284 = vmatpush1.bf16.msra.mxu0 0
        %285 = vmatprep.subr.bf16.mxu0 0
        %286 = vmatpush1.bf16.msra.mxu0 0
        %287 = vmatprep.subr.bf16.mxu0 0
        %288 = vmatpush1.bf16.msra.mxu0 0
        %289 = vmatprep.subr.bf16.mxu0 0
        %290 = vmatpush1.bf16.msra.mxu0 0
        %291 = vmatprep.subr.bf16.mxu0 0
        %292 = vmatpush1.bf16.msra.mxu0 0
        %293 = vmatprep.subr.bf16.mxu0 0
        %294 = vmatpush1.bf16.msra.mxu0 0
        %295 = vmatprep.mubr.bf16.mxu0 0
        %296 = vmatmul.mubr.bf16.gmra.mrb[0].mxu0 %v261
        %v297 = vpop.f32.mrb[0].mxu0
        %v298 = vadd.f32 %v233, %v297
        %v299 = vpop.f32.mrb[0].mxu0
        %v300 = vpop.f32.mrb[0].mxu0
        %v301 = vadd.f32 %v233, %v300
        %v302 = vpop.f32.mrb[0].mxu0
        %303 = vdwg.mxu0
        %v304 = vpack.c.bf16 %v301, %v298
        %v306 = vunpack.c.l.b16 %v304
        %v307 = vunpack.c.h.b16 %v304
        %v308 = vpack.c.b16 %v306, %v306
        %v309 = vpack.c.b16 %v307, %v307
        %vm312 = vcmask 257024
        %313 = vst.msk [vmem:[%s215] sm:$0xf] %vm312, %v308
        %314 = vst.msk [vmem:[%s215 + $0x4] sm:$0xf] %vm312, %v309
        %s315 = sand.u32 %s97, 1
        %s316 = scalar_lea.sflag [#allocation4], %s315
        %s317 = sand.u32 %s97, 1
        %s318 = smul.addr %s317, 8
        %s319 = scalar_lea.vmem [#allocation8], %s318
        // Predicated region
        $region45: #{tpu_custom_call.1} parent=31 // pred_check
          %p320 = pneg %p107
        $region46: #{tpu_custom_call.1} parent=31 // pred_check_branch
          %322 = sbr.rel (%p320) target = $region48
        $region47: #{tpu_custom_call.1} parent=31 // pred_region
          %s324 = ssub.s32 128, 128
          %325 = vsyncadd %s316, %s324
          %s326 = smul.addr %s21, 2
          %s327 = smul.addr %s326, 64
          %s328 = scalar_lea.hbm %s3, %s327
          %s329 = sshll.u32 %s319, 4
          %s330 = int_to_ptr.vmem [resolvable:$true] %s329
          %335 = dma.vmem_to_hbm [thread:$0]  %s330, 128, %s328, %s316, 64, 64, 4
        $region48: #{tpu_custom_call.1} parent=31 // pred_fallthru
          _
      $region32: #{tpu_custom_call.1} parent=5 // pred_fallthru
        _
      %p336 = scmp.le.s32.totalorder 2, %s16
      // Predicated region
      $region49: #{tpu_custom_call.1} parent=5 // pred_check
        %p337 = pneg %p336
      $region50: #{tpu_custom_call.1} parent=5 // pred_check_branch
        %339 = sbr.rel (%p337) target = $region52
      $region51: #{tpu_custom_call.1} parent=5 // pred_region
        %s340 = ssub.s32 %s16, 2
        // Predicated region
        $region53: #{tpu_custom_call.1} parent=51 // pred_check
          %p341 = pneg %p113
        $region54: #{tpu_custom_call.1} parent=51 // pred_check_branch
          %343 = sbr.rel (%p341) target = $region56
        $region55: #{tpu_custom_call.1} parent=51 // pred_region
          %s344 = sand.u32 %s98, 1
          %s345 = scalar_lea.sflag [#allocation4], %s344
          %s346 = sand.u32 %s98, 1
          %s347 = smul.addr %s346, 8
          %s348 = scalar_lea.vmem [#allocation8], %s347
          %349 = dma.done %s345, 128
        $region56: #{tpu_custom_call.1} parent=51 // pred_fallthru
          _
      $region52: #{tpu_custom_call.1} parent=5 // pred_fallthru
        _
    $region6: #{tpu_custom_call.1} parent=1 // loop_footer
      %s20 = sadd.s32 1, %s16
    $region7: #{tpu_custom_call.1} parent=1 // loop_footer_branch
      %15 = sbr.rel target = $region3
    $region8: #{tpu_custom_call.1} parent=1 // loop_exit
      _
    %350 = vsyncpa [#allocation3], 1
    %s351 = scalar_lea.sflag [#allocation3], 1
    %352 = vsyncpa %s351, 1
    %353 = vsyncpa [#allocation6], 1
    %354 = vsyncpa [#allocation4], 1
    %s355 = scalar_lea.sflag [#allocation4], 1
    %356 = vsyncpa %s355, 1

</llo_original>
